<compile_context>
chip_gen: v6e
topology: v6e:2x2x1
jax: 0.10.0
libtpu: 0.0.40
codegen_flags: <defaults>
</compile_context>

<pallas_src>
import functools

import jax
import jax.numpy as jnp
from jax.experimental import pallas as pl
from jax.experimental.pallas import tpu as pltpu

LANE = 128
MAX_BLOCK_ROWS = 1024  # (1024, 128) f32 block = 512 KiB per stream


def _spike_relu_kernel(x_ref, vin_ref, vth_ref, spikes_ref, vout_ref):
    # Elementwise integrate-and-fire on one (block_rows, 128) tile.
    v = vin_ref[...] + x_ref[...]
    v_th = vth_ref[0].astype(v.dtype)          # scalar read from SMEM
    fire = v >= v_th
    spikes_ref[...] = fire.astype(spikes_ref.dtype)
    vout_ref[...] = jnp.where(fire, jnp.zeros_like(v), v)


def _run_spike_relu_2d(x2d, v2d, vth_arr):
    rows, cols = x2d.shape
    assert cols == LANE
    block_rows = min(rows, MAX_BLOCK_ROWS)
    grid = (pl.cdiv(rows, block_rows),)

    tile_spec = pl.BlockSpec((block_rows, LANE), lambda i: (i, 0))
    smem_spec = pl.BlockSpec(memory_space=pltpu.MemorySpace.SMEM)

    spikes, vout = pl.pallas_call(
        _spike_relu_kernel,
        out_shape=(
            jax.ShapeDtypeStruct((rows, LANE), x2d.dtype),
            jax.ShapeDtypeStruct((rows, LANE), x2d.dtype),
        ),
        grid_spec=pltpu.PrefetchScalarGridSpec(
            num_scalar_prefetch=0,
            grid=grid,
            in_specs=[tile_spec, tile_spec, smem_spec],
            out_specs=[tile_spec, tile_spec],
        ),
        # Update the membrane potential in place (input v2d -> output vout).
        input_output_aliases={1: 1},
        compiler_params=pltpu.CompilerParams(
            dimension_semantics=("parallel",)
        ),
    )(x2d, v2d, vth_arr)
    return spikes, vout


@functools.partial(jax.jit, donate_argnums=(1,))
def _spike_relu_step(x, vmem, vth_arr):
    orig_shape = x.shape
    n = x.size
    pad = (-n) % LANE

    x_flat = x.reshape(-1)
    v_flat = vmem.reshape(-1)
    if pad:  # rare path; typical NCHW activation sizes are multiples of 128
        x_flat = jnp.pad(x_flat, (0, pad))
        v_flat = jnp.pad(v_flat, (0, pad))
    rows = (n + pad) // LANE

    x2d = x_flat.reshape(rows, LANE)
    v2d = v_flat.reshape(rows, LANE)

    spikes2d, vout2d = _run_spike_relu_2d(x2d, v2d, vth_arr)

    if pad:
        spikes = spikes2d.reshape(-1)[:n].reshape(orig_shape)
        new_vmem = vout2d.reshape(-1)[:n].reshape(orig_shape)
    else:
        spikes = spikes2d.reshape(orig_shape)
        new_vmem = vout2d.reshape(orig_shape)
    return spikes, new_vmem


def spike_relu_forward(x, vmem, v_th):
    """One timestep of the spiking ReLU.

    x:    input currents, any shape (e.g. NCHW), float dtype.
    vmem: membrane potential, same shape/dtype as x (zeros on first call).
          NOTE: vmem is donated (updated in place); use the returned new_vmem.
    Returns (spikes, new_vmem), both shaped like x.
    """
    vth_arr = jnp.asarray([v_th], dtype=jnp.float32)
    return _spike_relu_step(x, vmem, vth_arr)


class SpikeRelu:
    """Stateful wrapper mirroring the PyTorch spikeRelu module."""

    def __init__(self, v_th):
        self.threshold = float(v_th)
        self._vth_arr = jnp.asarray([self.threshold], dtype=jnp.float32)
        self.vmem = None  # lazily expanded to x.shape, like torch expand

    def __call__(self, x):
        if (
            self.vmem is None
            or self.vmem.shape != x.shape
            or self.vmem.dtype != x.dtype
        ):
            self.vmem = jnp.zeros(x.shape, x.dtype)
        spikes, self.vmem = _spike_relu_step(x, self.vmem, self._vth_arr)
        return spikes


if __name__ == "__main__":
    key = jax.random.PRNGKey(0)
    # NCHW input, small shapes.
    x_shape = (2, 4, 16, 16)
    v_th = 1.0

    layer = SpikeRelu(v_th)

    # Run two timesteps to exercise the persistent membrane potential.
    k1, k2 = jax.random.split(key)
    x1 = jax.random.uniform(k1, x_shape, dtype=jnp.float32, minval=0.0, maxval=1.5)
    x2 = jax.random.uniform(k2, x_shape, dtype=jnp.float32, minval=0.0, maxval=1.5)

    s1 = layer(x1)
    s2 = layer(x2)
    jax.block_until_ready((s1, s2, layer.vmem))

    # Reference check (pure JAX, mirrors the PyTorch semantics exactly).
    def ref_step(x, vmem, th):
        v = vmem + x
        spikes = jnp.where(v >= th, 1.0, 0.0).astype(x.dtype)
        v_new = jnp.where(v >= th, 0.0, v)
        return spikes, v_new

    v_ref = jnp.zeros(x_shape, jnp.float32)
    r1, v_ref = ref_step(x1, v_ref, v_th)
    r2, v_ref = ref_step(x2, v_ref, v_th)

    assert jnp.allclose(s1, r1)
    assert jnp.allclose(s2, r2)
    assert jnp.allclose(layer.vmem, v_ref)

    print("KERNEL_OK")
</pallas_src>

<mosaic_0001>
module attributes {stable_mosaic.version = 11 : i64} {
  func.func @_spike_relu_kernel(%arg0: i32, %arg1: memref<16x128xf32, #tpu.memory_space<vmem>>, %arg2: memref<16x128xf32, #tpu.memory_space<vmem>>, %arg3: memref<1xf32, #tpu.memory_space<smem>>, %arg4: memref<16x128xf32, #tpu.memory_space<vmem>>, %arg5: memref<16x128xf32, #tpu.memory_space<vmem>>) attributes {dimension_semantics = [#tpu.dimension_semantics<parallel>], iteration_bounds = array<i64: 1>, scalar_prefetch = 0 : i64, scratch_operands = 0 : i64, tpu.core_type = #tpu.core_type<tc>, window_params = [{transform_indices = @transform_0, window_bounds = array<i64: 16, 128>}, {transform_indices = @transform_1, window_bounds = array<i64: 16, 128>}, {transform_indices = @transform_2, window_bounds = array<i64: 1>}, {transform_indices = @transform_3, window_bounds = array<i64: 16, 128>}, {transform_indices = @transform_4, window_bounds = array<i64: 16, 128>}]} {
    %c0 = arith.constant 0 : index
    %c0_0 = arith.constant 0 : index
    %0 = vector.load %arg2[%c0, %c0_0] : memref<16x128xf32, #tpu.memory_space<vmem>>, vector<16x128xf32>
    %c0_1 = arith.constant 0 : index
    %c0_2 = arith.constant 0 : index
    %1 = vector.load %arg1[%c0_1, %c0_2] : memref<16x128xf32, #tpu.memory_space<vmem>>, vector<16x128xf32>
    %2 = arith.addf %0, %1 : vector<16x128xf32>
    %c0_3 = arith.constant 0 : index
    %3 = memref.load %arg3[%c0_3] : memref<1xf32, #tpu.memory_space<smem>>
    %4 = vector.broadcast %3 : f32 to vector<16x128xf32>
    %5 = arith.cmpf oge, %2, %4 : vector<16x128xf32>
    %6 = arith.extui %5 : vector<16x128xi1> to vector<16x128xi32>
    %7 = arith.sitofp %6 : vector<16x128xi32> to vector<16x128xf32>
    %c0_4 = arith.constant 0 : index
    %c0_5 = arith.constant 0 : index
    %8 = vector.load %arg4[%c0_4, %c0_5] : memref<16x128xf32, #tpu.memory_space<vmem>>, vector<16x128xf32>
    tpu.vector_store %arg4[%c0_4, %c0_5], %7 {strides = array<i32>} : memref<16x128xf32, #tpu.memory_space<vmem>>, vector<16x128xf32>,
    %cst = arith.constant 0.000000e+00 : f32
    %9 = vector.broadcast %cst : f32 to vector<16x128xf32>
    %10 = arith.select %5, %9, %2 : vector<16x128xi1>, vector<16x128xf32>
    %c0_6 = arith.constant 0 : index
    %c0_7 = arith.constant 0 : index
    %11 = vector.load %arg5[%c0_6, %c0_7] : memref<16x128xf32, #tpu.memory_space<vmem>>, vector<16x128xf32>
    tpu.vector_store %arg5[%c0_6, %c0_7], %10 {strides = array<i32>} : memref<16x128xf32, #tpu.memory_space<vmem>>, vector<16x128xf32>,
    return
  }
  func.func @transform_0(%arg0: i32) -> (i32, i32) {
    %c0_i32 = arith.constant 0 : i32
    %c0_i32_0 = arith.constant 0 : i32
    return %arg0, %c0_i32 : i32, i32
  }
  func.func @transform_1(%arg0: i32) -> (i32, i32) {
    %c0_i32 = arith.constant 0 : i32
    %c0_i32_0 = arith.constant 0 : i32
    return %arg0, %c0_i32 : i32, i32
  }
  func.func @transform_2(%arg0: i32) -> i32 {
    %c0_i32 = arith.constant 0 : i32
    %c0_i32_0 = arith.constant 0 : i32
    return %c0_i32 : i32
  }
  func.func @transform_3(%arg0: i32) -> (i32, i32) {
    %c0_i32 = arith.constant 0 : i32
    %c0_i32_0 = arith.constant 0 : i32
    return %arg0, %c0_i32 : i32, i32
  }
  func.func @transform_4(%arg0: i32) -> (i32, i32) {
    %c0_i32 = arith.constant 0 : i32
    %c0_i32_0 = arith.constant 0 : i32
    return %arg0, %c0_i32 : i32, i32
  }
}

</mosaic_0001>

<llo_original>
// kernel: _spike_relu_step.1
$region0: #{_spike_relu_step.1}
  #allocation0 [shape = 'u32[]', space=smem, size = 0x4, offset = 0x4, fixed_abs, tag = 'smem constant byte address 0x4 - core index']
  #allocation1 [shape = 'u32[144,128]{1,0:T(1,128)}', space=vmem, size = 0x12000, scoped, tag = 'internal scratch']
  #allocation2 [shape = 'f32[1]{0:T(128)S(6)}', space=smem, size = 0x200, scoped, tag = 'scoped memory for _spike_relu_step.1']
  %s0 = inlined_call_operand.vmem [shape: f32[16,128], index: 0, kind: input, shape index: {}]
  %s1 = inlined_call_operand.vmem [shape: f32[16,128], index: 1, kind: input, shape index: {}, may-alias: {1,4}]
  %s2 = inlined_call_operand.<no memory space> [shape: f32[1], index: 2, kind: input, shape index: {}]
  %s3 = inlined_call_operand.vmem [shape: f32[16,128], index: 3, kind: output, shape index: {0}]
  %s4 = inlined_call_operand.vmem [shape: f32[16,128], index: 4, kind: output, shape index: {1}, may-alias: {1,4}]
  %5 = xla_tuple %s3, %s4
  %s6 = sld [smem:[#allocation0]]
  $region30: #{_spike_relu_step.1} parent=0
    _
  %s8 = ssub.s32 1, %s6
  %s9 = scalar_select 0, %s8, %s6
  %10 = sst [smem:[#allocation2]] %s2
  // Predicated region
  $region2: #{_spike_relu_step.1} parent=0 // pred_check
    _
  $region3: #{_spike_relu_step.1} parent=0 // pred_check_branch
    %12 = sbr.rel (0) target = $region5
  $region4: #{_spike_relu_step.1} parent=0 // pred_region
    _
  $region5: #{_spike_relu_step.1} parent=0 // pred_fallthru
    _
  // Predicated region
  $region6: #{_spike_relu_step.1} parent=0 // pred_check
    _
  $region7: #{_spike_relu_step.1} parent=0 // pred_check_branch
    %14 = sbr.rel (0) target = $region9
  $region8: #{_spike_relu_step.1} parent=0 // pred_region
    _
  $region9: #{_spike_relu_step.1} parent=0 // pred_fallthru
    _
  // Predicated region
  $region10: #{_spike_relu_step.1} parent=0 // pred_check
    _
  $region11: #{_spike_relu_step.1} parent=0 // pred_check_branch
    %16 = sbr.rel (0) target = $region13
  $region12: #{_spike_relu_step.1} parent=0 // pred_region
    _
  $region13: #{_spike_relu_step.1} parent=0 // pred_fallthru
    _
  %v17 = vld [vmem:[%s1] sm:$0xff]
  %v18 = vld [vmem:[%s1 + $0x8] sm:$0xff]
  %v19 = vld [vmem:[%s0] sm:$0xff]
  %v20 = vld [vmem:[%s0 + $0x8] sm:$0xff]
  %v21 = vadd.f32 %v17, %v19
  %v22 = vadd.f32 %v18, %v20
  %s23 = sld [smem:[#allocation2]]
  %v24 = vstv %s23
  %vm25 = vcmp.ge.f32.partialorder %v21, %v24
  %vm26 = vcmp.ge.f32.partialorder %v22, %v24
  %v27 = vsel %vm25, 1, 0
  %v28 = vsel %vm26, 1, 0
  %v29 = vcvt.s32.f32 %v27
  %v30 = vcvt.s32.f32 %v28
  %31 = vst [vmem:[%s3] sm:$0xff] %v29
  %32 = vst [vmem:[%s3 + $0x8] sm:$0xff] %v30
  %v33 = vsel %vm25, 0.0, %v21
  %v34 = vsel %vm26, 0.0, %v22
  %35 = vst [vmem:[%s4] sm:$0xff] %v33
  %36 = vst [vmem:[%s4 + $0x8] sm:$0xff] %v34
  // Predicated region
  $region14: #{_spike_relu_step.1} parent=0 // pred_check
    _
  $region15: #{_spike_relu_step.1} parent=0 // pred_check_branch
    %38 = sbr.rel (0) target = $region17
  $region16: #{_spike_relu_step.1} parent=0 // pred_region
    _
  $region17: #{_spike_relu_step.1} parent=0 // pred_fallthru
    _
  // Predicated region
  $region18: #{_spike_relu_step.1} parent=0 // pred_check
    _
  $region19: #{_spike_relu_step.1} parent=0 // pred_check_branch
    %40 = sbr.rel (0) target = $region21
  $region20: #{_spike_relu_step.1} parent=0 // pred_region
    _
  $region21: #{_spike_relu_step.1} parent=0 // pred_fallthru
    _
  // Predicated region
  $region22: #{_spike_relu_step.1} parent=0 // pred_check
    _
  $region23: #{_spike_relu_step.1} parent=0 // pred_check_branch
    %42 = sbr.rel (0) target = $region25
  $region24: #{_spike_relu_step.1} parent=0 // pred_region
    _
  $region25: #{_spike_relu_step.1} parent=0 // pred_fallthru
    _
  // Predicated region
  $region26: #{_spike_relu_step.1} parent=0 // pred_check
    _
  $region27: #{_spike_relu_step.1} parent=0 // pred_check_branch
    %44 = sbr.rel (0) target = $region29
  $region28: #{_spike_relu_step.1} parent=0 // pred_region
    _
  $region29: #{_spike_relu_step.1} parent=0 // pred_fallthru
    _

</llo_original>
